<compile_context>
chip_gen: v6e
topology: v6e:2x2x1
jax: 0.10.0
libtpu: 0.0.40
codegen_flags: <defaults>
</compile_context>

<pallas_src>
import jax
import jax.numpy as jnp
from jax import lax
from jax.experimental import pallas as pl
from jax.experimental.pallas import tpu as pltpu

# ---------------- model config (small shapes) ----------------
N = 2                      # batch
C, H, W = 3, 16, 16        # input_dim
KN = 10                    # kernel_num (conv out channels)
K = 3                      # kernel_size
PAD, STRIDE = 0, 1
HIDDEN = 10
OUT = 10

OH = (H + 2 * PAD - K) // STRIDE + 1        # 14
OW = (W + 2 * PAD - K) // STRIDE + 1        # 14
PH, PW = OH // 2, OW // 2                   # 7, 7
PHW = PH * PW                               # 49
CKK = C * K * K                             # 27
POOL_FLAT = PHW * KN                        # 490 (torch pool_output_size)

LANE = 128                                  # TPU lane width
SLAB = N * LANE                             # 256 lanes per pool offset (n-major)
NLANES = 4 * SLAB                           # 1024 lanes total (4 pool offsets)
FLAT_PAD = KN * LANE                        # 1280 lane-padded flatten width
MROWS = 8                                   # sublane-padded batch / output rows

# packed-parameter buffer layout (8-aligned row offsets, zero padded)
WC_ROW, W2_ROW, B1_ROW, B2_ROW, PAR_ROWS = 0, 16, 32, 40, 48


# ---------------- fused Pallas kernel ----------------
def fused_convnet_kernel(pt_ref, par_ref, w1_ref, o_ref, flat_ref):
    # pt_ref:   (CKK, 4*N*128)  im2col patches; lanes = (pool-offset, n, p_pad)
    # par_ref:  (48, 128)       packed params: rows 0..9  = conv W (cols 0..26)
    #                             + conv b (col 27); rows 16..25 = fc2 W^T;
    #                             row 32 = fc1 b; row 40 = fc2 b; rest zero.
    # w1_ref:   (KN*128, HIDDEN) fc1 weight, zero-padded per-channel to 128 rows
    # o_ref:    (8, 128)        lane-dense logits (valid part [:N, :OUT])
    # flat_ref: (8, KN*128)     VMEM scratch: torch-order flattened activations

    # conv for all 4 pool offsets in ONE matmul
    wc = par_ref[WC_ROW:WC_ROW + KN, 0:CKK]                          # (KN, CKK)
    acc = jnp.dot(wc, pt_ref[...], preferred_element_type=jnp.float32)  # (KN,1024)

    # 2x2 max-pool: elementwise max over 4 lane-aligned 256-wide slabs
    pooled = jnp.maximum(
        jnp.maximum(acc[:, 0:SLAB], acc[:, SLAB:2 * SLAB]),
        jnp.maximum(acc[:, 2 * SLAB:3 * SLAB], acc[:, 3 * SLAB:4 * SLAB]))

    # bias once (hoisted past the max; per-channel constant) + ReLU
    bc = par_ref[WC_ROW:WC_ROW + KN, CKK:CKK + 1]                    # (KN, 1)
    pooled = jnp.maximum(pooled + bc, 0.0)                           # (KN, N*128)

    # flatten to torch (channel, ph, pw) order: full-width 128-lane aligned
    # copies only (padded lanes hit zero rows of w1, so they are inert)
    flat_ref[...] = jnp.zeros_like(flat_ref)
    for n in range(N):                                               # static unroll
        for c in range(KN):
            flat_ref[n:n + 1, c * LANE:(c + 1) * LANE] = (
                pooled[c:c + 1, n * LANE:(n + 1) * LANE])

    # fc1 + ReLU + fc2 on VMEM-resident activations; lane-dense output store
    h = jnp.dot(flat_ref[...], w1_ref[...],
                preferred_element_type=jnp.float32)                  # (8, HIDDEN)
    b1 = par_ref[B1_ROW:B1_ROW + 1, 0:HIDDEN]                        # (1, HIDDEN)
    h = jnp.maximum(h + b1, 0.0)
    w2 = par_ref[W2_ROW:W2_ROW + HIDDEN, :]                          # (HIDDEN, 128)
    b2 = par_ref[B2_ROW:B2_ROW + 1, :]                               # (1, 128)
    o_ref[...] = jnp.dot(h, w2, preferred_element_type=jnp.float32) + b2


# ---------------- wrappers ----------------
def _build_patches(x):
    """(N, C, H, W) -> (CKK, 4*N*128), no transpose.

    Rows are (c, kh, kw) matching torch's conv-weight flatten; lanes are
    ((dy,dx) pool offset, n, ph*PW+pw zero-padded to 128). Enumerating the
    strided slices in (c, kh, kw, dy, dx) order means a plain stack + pad +
    reshape already lands in the kernel layout.
    """
    slabs = [x[:, c, dy + kh:dy + kh + 2 * PH:2, dx + kw:dx + kw + 2 * PW:2]
             for c in range(C) for kh in range(K) for kw in range(K)
             for dy in range(2) for dx in range(2)]                  # each (N,PH,PW)
    p = jnp.stack(slabs, axis=0).reshape(CKK, 4, N, PHW)
    p = jnp.pad(p, ((0, 0), (0, 0), (0, 0), (0, LANE - PHW)))
    return p.reshape(CKK, NLANES)


def _pack_params(wc, bc, w1, b1, w2, b2):
    """Pack all small params into one (48,128) buffer; pad fc1 weight rows."""
    par = jnp.zeros((PAR_ROWS, LANE), jnp.float32)
    par = par.at[WC_ROW:WC_ROW + KN, 0:CKK].set(wc.reshape(KN, CKK))
    par = par.at[WC_ROW:WC_ROW + KN, CKK].set(bc)
    par = par.at[W2_ROW:W2_ROW + HIDDEN, 0:OUT].set(w2.T)
    par = par.at[B1_ROW, 0:HIDDEN].set(b1)
    par = par.at[B2_ROW, 0:OUT].set(b2)
    # w1_pad[c*128 + p, j] = w1[j, c*PHW + p] for p < PHW, else 0
    w1p = jnp.pad(w1.T.reshape(KN, PHW, HIDDEN),
                  ((0, 0), (0, LANE - PHW), (0, 0))).reshape(FLAT_PAD, HIDDEN)
    return par, w1p


@jax.jit
def simple_conv_net(x, wc, bc, w1, b1, w2, b2):
    patches = _build_patches(x)
    par, w1p = _pack_params(wc, bc, w1, b1, w2, b2)

    vmem_spec = pl.BlockSpec(memory_space=pltpu.MemorySpace.VMEM)
    out = pl.pallas_call(
        fused_convnet_kernel,
        out_shape=jax.ShapeDtypeStruct((MROWS, LANE), jnp.float32),
        in_specs=[vmem_spec, vmem_spec, vmem_spec],
        out_specs=vmem_spec,
        scratch_shapes=[pltpu.VMEM((MROWS, FLAT_PAD), jnp.float32)],
    )(patches, par, w1p)
    return out[:N, :OUT]


def reference(x, wc, bc, w1, b1, w2, b2):
    """Pure-JAX reference reproducing the PyTorch forward exactly (NCHW)."""
    y = lax.conv_general_dilated(
        x, wc, window_strides=(STRIDE, STRIDE), padding="VALID",
        dimension_numbers=("NCHW", "OIHW", "NCHW"))
    y = y + bc[None, :, None, None]                              # (N, KN, OH, OW)
    y = y.reshape(N, KN, PH, 2, PW, 2).max(axis=(3, 5))          # maxpool 2x2
    y = jnp.maximum(y, 0.0)                                      # relu
    y = y.reshape(N, -1)                                         # flatten (C,H,W)
    y = jnp.maximum(y @ w1.T + b1, 0.0)                          # fc1 + relu
    return y @ w2.T + b2                                         # fc2


if __name__ == "__main__":
    key = jax.random.PRNGKey(0)
    ks = jax.random.split(key, 7)
    x = jax.random.normal(ks[0], (N, C, H, W), jnp.float32)
    wc = jax.random.normal(ks[1], (KN, C, K, K), jnp.float32) * 0.1
    bc = jax.random.normal(ks[2], (KN,), jnp.float32) * 0.1
    w1 = jax.random.normal(ks[3], (HIDDEN, POOL_FLAT), jnp.float32) * 0.05
    b1 = jax.random.normal(ks[4], (HIDDEN,), jnp.float32) * 0.1
    w2 = jax.random.normal(ks[5], (OUT, HIDDEN), jnp.float32) * 0.1
    b2 = jax.random.normal(ks[6], (OUT,), jnp.float32) * 0.1

    out = simple_conv_net(x, wc, bc, w1, b1, w2, b2)
    out = jax.block_until_ready(out)

    ref = reference(x, wc, bc, w1, b1, w2, b2)
    assert out.shape == (N, OUT), out.shape
    assert jnp.allclose(out, ref, atol=1e-4, rtol=1e-4), (out, ref)
    print("KERNEL_OK")
</pallas_src>

<mosaic_0001>
module attributes {stable_mosaic.version = 11 : i64} {
  func.func @fused_convnet_kernel(%arg0: memref<27x1024xf32, #tpu.memory_space<vmem>>, %arg1: memref<48x128xf32, #tpu.memory_space<vmem>>, %arg2: memref<1280x10xf32, #tpu.memory_space<vmem>>, %arg3: memref<8x128xf32, #tpu.memory_space<vmem>>, %arg4: memref<8x1280xf32, #tpu.memory_space<vmem>>) attributes {dimension_semantics = [], scalar_prefetch = 0 : i64, scratch_operands = 1 : i64, tpu.core_type = #tpu.core_type<tc>} {
    %c0 = arith.constant 0 : index
    %c0_0 = arith.constant 0 : index
    %0 = vector.load %arg1[%c0, %c0_0] : memref<48x128xf32, #tpu.memory_space<vmem>>, vector<10x27xf32>
    %c0_1 = arith.constant 0 : index
    %c0_2 = arith.constant 0 : index
    %1 = vector.load %arg0[%c0_1, %c0_2] : memref<27x1024xf32, #tpu.memory_space<vmem>>, vector<27x1024xf32>
    %cst = arith.constant dense<0.000000e+00> : vector<10x1024xf32>
    %2 = tpu.matmul %0, %1, %cst {dimension_numbers = #tpu.dot_dimension_numbers<[1], [0], [0], [1], [0, 0, 1, 1], [], []>} : vector<10x27xf32>, vector<27x1024xf32>, vector<10x1024xf32> -> vector<10x1024xf32>
    %3 = vector.extract_strided_slice %2 {offsets = [0, 0], sizes = [10, 256], strides = [1, 1]} : vector<10x1024xf32> to vector<10x256xf32>
    %4 = vector.extract_strided_slice %2 {offsets = [0, 256], sizes = [10, 256], strides = [1, 1]} : vector<10x1024xf32> to vector<10x256xf32>
    %5 = arith.maximumf %3, %4 : vector<10x256xf32>
    %6 = vector.extract_strided_slice %2 {offsets = [0, 512], sizes = [10, 256], strides = [1, 1]} : vector<10x1024xf32> to vector<10x256xf32>
    %7 = vector.extract_strided_slice %2 {offsets = [0, 768], sizes = [10, 256], strides = [1, 1]} : vector<10x1024xf32> to vector<10x256xf32>
    %8 = arith.maximumf %6, %7 : vector<10x256xf32>
    %9 = arith.maximumf %5, %8 : vector<10x256xf32>
    %c0_3 = arith.constant 0 : index
    %c27 = arith.constant 27 : index
    %10 = vector.load %arg1[%c0_3, %c27] : memref<48x128xf32, #tpu.memory_space<vmem>>, vector<10x1xf32>
    %11 = vector.broadcast %10 : vector<10x1xf32> to vector<10x256xf32>
    %12 = arith.addf %9, %11 : vector<10x256xf32>
    %cst_4 = arith.constant 0.000000e+00 : f32
    %13 = vector.broadcast %cst_4 : f32 to vector<10x256xf32>
    %14 = arith.maximumf %12, %13 : vector<10x256xf32>
    %cst_5 = arith.constant 0.000000e+00 : f32
    %15 = vector.broadcast %cst_5 : f32 to vector<8x1280xf32>
    %c0_6 = arith.constant 0 : index
    %c0_7 = arith.constant 0 : index
    %16 = vector.load %arg4[%c0_6, %c0_7] : memref<8x1280xf32, #tpu.memory_space<vmem>>, vector<8x1280xf32>
    tpu.vector_store %arg4[%c0_6, %c0_7], %15 {strides = array<i32>} : memref<8x1280xf32, #tpu.memory_space<vmem>>, vector<8x1280xf32>,
    %17 = vector.extract_strided_slice %14 {offsets = [0, 0], sizes = [1, 128], strides = [1, 1]} : vector<10x256xf32> to vector<1x128xf32>
    %c0_8 = arith.constant 0 : index
    %c0_9 = arith.constant 0 : index
    %18 = vector.load %arg4[%c0_8, %c0_9] : memref<8x1280xf32, #tpu.memory_space<vmem>>, vector<1x128xf32>
    tpu.vector_store %arg4[%c0_8, %c0_9], %17 {strides = array<i32>} : memref<8x1280xf32, #tpu.memory_space<vmem>>, vector<1x128xf32>,
    %19 = vector.extract_strided_slice %14 {offsets = [1, 0], sizes = [1, 128], strides = [1, 1]} : vector<10x256xf32> to vector<1x128xf32>
    %c0_10 = arith.constant 0 : index
    %c128 = arith.constant 128 : index
    %20 = vector.load %arg4[%c0_10, %c128] : memref<8x1280xf32, #tpu.memory_space<vmem>>, vector<1x128xf32>
    tpu.vector_store %arg4[%c0_10, %c128], %19 {strides = array<i32>} : memref<8x1280xf32, #tpu.memory_space<vmem>>, vector<1x128xf32>,
    %21 = vector.extract_strided_slice %14 {offsets = [2, 0], sizes = [1, 128], strides = [1, 1]} : vector<10x256xf32> to vector<1x128xf32>
    %c0_11 = arith.constant 0 : index
    %c256 = arith.constant 256 : index
    %22 = vector.load %arg4[%c0_11, %c256] : memref<8x1280xf32, #tpu.memory_space<vmem>>, vector<1x128xf32>
    tpu.vector_store %arg4[%c0_11, %c256], %21 {strides = array<i32>} : memref<8x1280xf32, #tpu.memory_space<vmem>>, vector<1x128xf32>,
    %23 = vector.extract_strided_slice %14 {offsets = [3, 0], sizes = [1, 128], strides = [1, 1]} : vector<10x256xf32> to vector<1x128xf32>
    %c0_12 = arith.constant 0 : index
    %c384 = arith.constant 384 : index
    %24 = vector.load %arg4[%c0_12, %c384] : memref<8x1280xf32, #tpu.memory_space<vmem>>, vector<1x128xf32>
    tpu.vector_store %arg4[%c0_12, %c384], %23 {strides = array<i32>} : memref<8x1280xf32, #tpu.memory_space<vmem>>, vector<1x128xf32>,
    %25 = vector.extract_strided_slice %14 {offsets = [4, 0], sizes = [1, 128], strides = [1, 1]} : vector<10x256xf32> to vector<1x128xf32>
    %c0_13 = arith.constant 0 : index
    %c512 = arith.constant 512 : index
    %26 = vector.load %arg4[%c0_13, %c512] : memref<8x1280xf32, #tpu.memory_space<vmem>>, vector<1x128xf32>
    tpu.vector_store %arg4[%c0_13, %c512], %25 {strides = array<i32>} : memref<8x1280xf32, #tpu.memory_space<vmem>>, vector<1x128xf32>,
    %27 = vector.extract_strided_slice %14 {offsets = [5, 0], sizes = [1, 128], strides = [1, 1]} : vector<10x256xf32> to vector<1x128xf32>
    %c0_14 = arith.constant 0 : index
    %c640 = arith.constant 640 : index
    %28 = vector.load %arg4[%c0_14, %c640] : memref<8x1280xf32, #tpu.memory_space<vmem>>, vector<1x128xf32>
    tpu.vector_store %arg4[%c0_14, %c640], %27 {strides = array<i32>} : memref<8x1280xf32, #tpu.memory_space<vmem>>, vector<1x128xf32>,
    %29 = vector.extract_strided_slice %14 {offsets = [6, 0], sizes = [1, 128], strides = [1, 1]} : vector<10x256xf32> to vector<1x128xf32>
    %c0_15 = arith.constant 0 : index
    %c768 = arith.constant 768 : index
    %30 = vector.load %arg4[%c0_15, %c768] : memref<8x1280xf32, #tpu.memory_space<vmem>>, vector<1x128xf32>
    tpu.vector_store %arg4[%c0_15, %c768], %29 {strides = array<i32>} : memref<8x1280xf32, #tpu.memory_space<vmem>>, vector<1x128xf32>,
    %31 = vector.extract_strided_slice %14 {offsets = [7, 0], sizes = [1, 128], strides = [1, 1]} : vector<10x256xf32> to vector<1x128xf32>
    %c0_16 = arith.constant 0 : index
    %c896 = arith.constant 896 : index
    %32 = vector.load %arg4[%c0_16, %c896] : memref<8x1280xf32, #tpu.memory_space<vmem>>, vector<1x128xf32>
    tpu.vector_store %arg4[%c0_16, %c896], %31 {strides = array<i32>} : memref<8x1280xf32, #tpu.memory_space<vmem>>, vector<1x128xf32>,
    %33 = vector.extract_strided_slice %14 {offsets = [8, 0], sizes = [1, 128], strides = [1, 1]} : vector<10x256xf32> to vector<1x128xf32>
    %c0_17 = arith.constant 0 : index
    %c1024 = arith.constant 1024 : index
    %34 = vector.load %arg4[%c0_17, %c1024] : memref<8x1280xf32, #tpu.memory_space<vmem>>, vector<1x128xf32>
    tpu.vector_store %arg4[%c0_17, %c1024], %33 {strides = array<i32>} : memref<8x1280xf32, #tpu.memory_space<vmem>>, vector<1x128xf32>,
    %35 = vector.extract_strided_slice %14 {offsets = [9, 0], sizes = [1, 128], strides = [1, 1]} : vector<10x256xf32> to vector<1x128xf32>
    %c0_18 = arith.constant 0 : index
    %c1152 = arith.constant 1152 : index
    %36 = vector.load %arg4[%c0_18, %c1152] : memref<8x1280xf32, #tpu.memory_space<vmem>>, vector<1x128xf32>
    tpu.vector_store %arg4[%c0_18, %c1152], %35 {strides = array<i32>} : memref<8x1280xf32, #tpu.memory_space<vmem>>, vector<1x128xf32>,
    %37 = vector.extract_strided_slice %14 {offsets = [0, 128], sizes = [1, 128], strides = [1, 1]} : vector<10x256xf32> to vector<1x128xf32>
    %c1 = arith.constant 1 : index
    %c0_19 = arith.constant 0 : index
    %38 = vector.load %arg4[%c1, %c0_19] : memref<8x1280xf32, #tpu.memory_space<vmem>>, vector<1x128xf32>
    tpu.vector_store %arg4[%c1, %c0_19], %37 {strides = array<i32>} : memref<8x1280xf32, #tpu.memory_space<vmem>>, vector<1x128xf32>,
    %39 = vector.extract_strided_slice %14 {offsets = [1, 128], sizes = [1, 128], strides = [1, 1]} : vector<10x256xf32> to vector<1x128xf32>
    %c1_20 = arith.constant 1 : index
    %c128_21 = arith.constant 128 : index
    %40 = vector.load %arg4[%c1_20, %c128_21] : memref<8x1280xf32, #tpu.memory_space<vmem>>, vector<1x128xf32>
    tpu.vector_store %arg4[%c1_20, %c128_21], %39 {strides = array<i32>} : memref<8x1280xf32, #tpu.memory_space<vmem>>, vector<1x128xf32>,
    %41 = vector.extract_strided_slice %14 {offsets = [2, 128], sizes = [1, 128], strides = [1, 1]} : vector<10x256xf32> to vector<1x128xf32>
    %c1_22 = arith.constant 1 : index
    %c256_23 = arith.constant 256 : index
    %42 = vector.load %arg4[%c1_22, %c256_23] : memref<8x1280xf32, #tpu.memory_space<vmem>>, vector<1x128xf32>
    tpu.vector_store %arg4[%c1_22, %c256_23], %41 {strides = array<i32>} : memref<8x1280xf32, #tpu.memory_space<vmem>>, vector<1x128xf32>,
    %43 = vector.extract_strided_slice %14 {offsets = [3, 128], sizes = [1, 128], strides = [1, 1]} : vector<10x256xf32> to vector<1x128xf32>
    %c1_24 = arith.constant 1 : index
    %c384_25 = arith.constant 384 : index
    %44 = vector.load %arg4[%c1_24, %c384_25] : memref<8x1280xf32, #tpu.memory_space<vmem>>, vector<1x128xf32>
    tpu.vector_store %arg4[%c1_24, %c384_25], %43 {strides = array<i32>} : memref<8x1280xf32, #tpu.memory_space<vmem>>, vector<1x128xf32>,
    %45 = vector.extract_strided_slice %14 {offsets = [4, 128], sizes = [1, 128], strides = [1, 1]} : vector<10x256xf32> to vector<1x128xf32>
    %c1_26 = arith.constant 1 : index
    %c512_27 = arith.constant 512 : index
    %46 = vector.load %arg4[%c1_26, %c512_27] : memref<8x1280xf32, #tpu.memory_space<vmem>>, vector<1x128xf32>
    tpu.vector_store %arg4[%c1_26, %c512_27], %45 {strides = array<i32>} : memref<8x1280xf32, #tpu.memory_space<vmem>>, vector<1x128xf32>,
    %47 = vector.extract_strided_slice %14 {offsets = [5, 128], sizes = [1, 128], strides = [1, 1]} : vector<10x256xf32> to vector<1x128xf32>
    %c1_28 = arith.constant 1 : index
    %c640_29 = arith.constant 640 : index
    %48 = vector.load %arg4[%c1_28, %c640_29] : memref<8x1280xf32, #tpu.memory_space<vmem>>, vector<1x128xf32>
    tpu.vector_store %arg4[%c1_28, %c640_29], %47 {strides = array<i32>} : memref<8x1280xf32, #tpu.memory_space<vmem>>, vector<1x128xf32>,
    %49 = vector.extract_strided_slice %14 {offsets = [6, 128], sizes = [1, 128], strides = [1, 1]} : vector<10x256xf32> to vector<1x128xf32>
    %c1_30 = arith.constant 1 : index
    %c768_31 = arith.constant 768 : index
    %50 = vector.load %arg4[%c1_30, %c768_31] : memref<8x1280xf32, #tpu.memory_space<vmem>>, vector<1x128xf32>
    tpu.vector_store %arg4[%c1_30, %c768_31], %49 {strides = array<i32>} : memref<8x1280xf32, #tpu.memory_space<vmem>>, vector<1x128xf32>,
    %51 = vector.extract_strided_slice %14 {offsets = [7, 128], sizes = [1, 128], strides = [1, 1]} : vector<10x256xf32> to vector<1x128xf32>
    %c1_32 = arith.constant 1 : index
    %c896_33 = arith.constant 896 : index
    %52 = vector.load %arg4[%c1_32, %c896_33] : memref<8x1280xf32, #tpu.memory_space<vmem>>, vector<1x128xf32>
    tpu.vector_store %arg4[%c1_32, %c896_33], %51 {strides = array<i32>} : memref<8x1280xf32, #tpu.memory_space<vmem>>, vector<1x128xf32>,
    %53 = vector.extract_strided_slice %14 {offsets = [8, 128], sizes = [1, 128], strides = [1, 1]} : vector<10x256xf32> to vector<1x128xf32>
    %c1_34 = arith.constant 1 : index
    %c1024_35 = arith.constant 1024 : index
    %54 = vector.load %arg4[%c1_34, %c1024_35] : memref<8x1280xf32, #tpu.memory_space<vmem>>, vector<1x128xf32>
    tpu.vector_store %arg4[%c1_34, %c1024_35], %53 {strides = array<i32>} : memref<8x1280xf32, #tpu.memory_space<vmem>>, vector<1x128xf32>,
    %55 = vector.extract_strided_slice %14 {offsets = [9, 128], sizes = [1, 128], strides = [1, 1]} : vector<10x256xf32> to vector<1x128xf32>
    %c1_36 = arith.constant 1 : index
    %c1152_37 = arith.constant 1152 : index
    %56 = vector.load %arg4[%c1_36, %c1152_37] : memref<8x1280xf32, #tpu.memory_space<vmem>>, vector<1x128xf32>
    tpu.vector_store %arg4[%c1_36, %c1152_37], %55 {strides = array<i32>} : memref<8x1280xf32, #tpu.memory_space<vmem>>, vector<1x128xf32>,
    %c0_38 = arith.constant 0 : index
    %c0_39 = arith.constant 0 : index
    %57 = vector.load %arg4[%c0_38, %c0_39] : memref<8x1280xf32, #tpu.memory_space<vmem>>, vector<8x1280xf32>
    %c0_40 = arith.constant 0 : index
    %c0_41 = arith.constant 0 : index
    %58 = vector.load %arg2[%c0_40, %c0_41] : memref<1280x10xf32, #tpu.memory_space<vmem>>, vector<1280x10xf32>
    %cst_42 = arith.constant dense<0.000000e+00> : vector<8x10xf32>
    %59 = tpu.matmul %57, %58, %cst_42 {dimension_numbers = #tpu.dot_dimension_numbers<[1], [0], [0], [1], [0, 0, 1, 1], [], []>} : vector<8x1280xf32>, vector<1280x10xf32>, vector<8x10xf32> -> vector<8x10xf32>
    %c32 = arith.constant 32 : index
    %c0_43 = arith.constant 0 : index
    %60 = vector.load %arg1[%c32, %c0_43] : memref<48x128xf32, #tpu.memory_space<vmem>>, vector<1x10xf32>
    %61 = vector.broadcast %60 : vector<1x10xf32> to vector<8x10xf32>
    %62 = arith.addf %59, %61 : vector<8x10xf32>
    %cst_44 = arith.constant 0.000000e+00 : f32
    %63 = vector.broadcast %cst_44 : f32 to vector<8x10xf32>
    %64 = arith.maximumf %62, %63 : vector<8x10xf32>
    %c16 = arith.constant 16 : index
    %c0_45 = arith.constant 0 : index
    %65 = vector.load %arg1[%c16, %c0_45] : memref<48x128xf32, #tpu.memory_space<vmem>>, vector<10x128xf32>
    %c40 = arith.constant 40 : index
    %c0_46 = arith.constant 0 : index
    %66 = vector.load %arg1[%c40, %c0_46] : memref<48x128xf32, #tpu.memory_space<vmem>>, vector<1x128xf32>
    %cst_47 = arith.constant dense<0.000000e+00> : vector<8x128xf32>
    %67 = tpu.matmul %64, %65, %cst_47 {dimension_numbers = #tpu.dot_dimension_numbers<[1], [0], [0], [1], [0, 0, 1, 1], [], []>} : vector<8x10xf32>, vector<10x128xf32>, vector<8x128xf32> -> vector<8x128xf32>
    %68 = vector.broadcast %66 : vector<1x128xf32> to vector<8x128xf32>
    %69 = arith.addf %67, %68 : vector<8x128xf32>
    %c0_48 = arith.constant 0 : index
    %c0_49 = arith.constant 0 : index
    %70 = vector.load %arg3[%c0_48, %c0_49] : memref<8x128xf32, #tpu.memory_space<vmem>>, vector<8x128xf32>
    tpu.vector_store %arg3[%c0_48, %c0_49], %69 {strides = array<i32>} : memref<8x128xf32, #tpu.memory_space<vmem>>, vector<8x128xf32>,
    return
  }
}

</mosaic_0001>

<llo_original>
// kernel: simple_conv_net.1
$region0: #{simple_conv_net.1}
  #allocation0 [shape = 'u32[]', space=smem, size = 0x4, offset = 0x4, fixed_abs, tag = 'smem constant byte address 0x4 - core index']
  #allocation1 [shape = 'u32[144,128]{1,0:T(1,128)}', space=vmem, size = 0x12000, scoped, tag = 'internal scratch']
  #allocation2 [shape = 'f32[8,1280]{1,0:T(8,128)}', space=vmem, size = 0xa000, scoped, tag = 'scratch operand']
  %s0 = inlined_call_operand.vmem [shape: f32[27,1024], index: 0, kind: input, shape index: {}]
  %s1 = inlined_call_operand.vmem [shape: f32[48,128], index: 1, kind: input, shape index: {}]
  %s2 = inlined_call_operand.vmem [shape: f32[1280,10], index: 2, kind: input, shape index: {}]
  %s3 = inlined_call_operand.vmem [shape: f32[8,128], index: 3, kind: output, shape index: {}]
  %s4 = sld [smem:[#allocation0]]
  $region22: #{simple_conv_net.1} parent=0
    _
  %s6 = ssub.s32 1, %s4
  %s7 = scalar_select 0, %s6, %s4
  // Predicated region
  $region2: #{simple_conv_net.1} parent=0 // pred_check
    _
  $region3: #{simple_conv_net.1} parent=0 // pred_check_branch
    %9 = sbr.rel (0) target = $region5
  $region4: #{simple_conv_net.1} parent=0 // pred_region
    _
  $region5: #{simple_conv_net.1} parent=0 // pred_fallthru
    _
  // Predicated region
  $region6: #{simple_conv_net.1} parent=0 // pred_check
    _
  $region7: #{simple_conv_net.1} parent=0 // pred_check_branch
    %11 = sbr.rel (0) target = $region9
  $region8: #{simple_conv_net.1} parent=0 // pred_region
    _
  $region9: #{simple_conv_net.1} parent=0 // pred_fallthru
    _
  // Predicated region
  $region10: #{simple_conv_net.1} parent=0 // pred_check
    _
  $region11: #{simple_conv_net.1} parent=0 // pred_check_branch
    %13 = sbr.rel (0) target = $region13
  $region12: #{simple_conv_net.1} parent=0 // pred_region
    _
  $region13: #{simple_conv_net.1} parent=0 // pred_fallthru
    _
  %v14 = vld [vmem:[%s1] sm:$0xff]
  %v15 = vld [vmem:[%s1 + $0x8] sm:$0x3]
  %v16 = vld [vmem:[%s0] sm:$0xff]
  %v17 = vld [vmem:[%s0 + $0x8] sm:$0xff]
  %v18 = vld [vmem:[%s0 + $0x10] sm:$0xff]
  %v19 = vld [vmem:[%s0 + $0x18] sm:$0xff]
  %v20 = vld [vmem:[%s0 + $0x20] sm:$0xff]
  %v21 = vld [vmem:[%s0 + $0x28] sm:$0xff]
  %v22 = vld [vmem:[%s0 + $0x30] sm:$0xff]
  %v23 = vld [vmem:[%s0 + $0x38] sm:$0xff]
  %v24 = vld [vmem:[%s0 + $0x40] sm:$0xff]
  %v25 = vld [vmem:[%s0 + $0x48] sm:$0xff]
  %v26 = vld [vmem:[%s0 + $0x50] sm:$0xff]
  %v27 = vld [vmem:[%s0 + $0x58] sm:$0xff]
  %v28 = vld [vmem:[%s0 + $0x60] sm:$0xff]
  %v29 = vld [vmem:[%s0 + $0x68] sm:$0xff]
  %v30 = vld [vmem:[%s0 + $0x70] sm:$0xff]
  %v31 = vld [vmem:[%s0 + $0x78] sm:$0xff]
  %v32 = vld [vmem:[%s0 + $0x80] sm:$0xff]
  %v33 = vld [vmem:[%s0 + $0x88] sm:$0xff]
  %v34 = vld [vmem:[%s0 + $0x90] sm:$0xff]
  %v35 = vld [vmem:[%s0 + $0x98] sm:$0xff]
  %v36 = vld [vmem:[%s0 + $0xa0] sm:$0xff]
  %v37 = vld [vmem:[%s0 + $0xa8] sm:$0xff]
  %v38 = vld [vmem:[%s0 + $0xb0] sm:$0xff]
  %v39 = vld [vmem:[%s0 + $0xb8] sm:$0xff]
  %v40 = vld [vmem:[%s0 + $0xc0] sm:$0x7]
  %v41 = vld [vmem:[%s0 + $0xc8] sm:$0x7]
  %v42 = vld [vmem:[%s0 + $0xd0] sm:$0x7]
  %v43 = vld [vmem:[%s0 + $0xd8] sm:$0x7]
  %v44 = vld [vmem:[%s0 + $0xe0] sm:$0x7]
  %v45 = vld [vmem:[%s0 + $0xe8] sm:$0x7]
  %v46 = vld [vmem:[%s0 + $0xf0] sm:$0x7]
  %v47 = vld [vmem:[%s0 + $0xf8] sm:$0x7]
  %vm48 = vcmask 220160
  %v50 = vsel %vm48, %v14, 0
  %v53 = vsel %vm48, %v15, 0
  %vm55 = vcmask 1042432
  %v57 = vsel %vm55, %v40, 0
  %v60 = vsel %vm55, %v41, 0
  %v63 = vsel %vm55, %v42, 0
  %v66 = vsel %vm55, %v43, 0
  %v69 = vsel %vm55, %v44, 0
  %v72 = vsel %vm55, %v45, 0
  %v75 = vsel %vm55, %v46, 0
  %v78 = vsel %vm55, %v47, 0
  %80 = vmatprep.subr.mxu0 0.0
  %81 = vmatpush1.msra.mxu0 0.0
  %82 = vmatprep.subr.mxu0 0.0
  %83 = vmatpush1.msra.mxu0 0.0
  %84 = vmatprep.subr.mxu0 0.0
  %85 = vmatpush1.msra.mxu0 0.0
  %86 = vmatprep.subr.mxu0 0.0
  %87 = vmatpush1.msra.mxu0 0.0
  %88 = vmatprep.subr.mxu0 0.0
  %89 = vmatpush1.msra.mxu0 0.0
  %90 = vmatprep.subr.mxu0 0.0
  %91 = vmatpush1.msra.mxu0 0.0
  %92 = vmatprep.subr.mxu0 0.0
  %93 = vmatpush1.msra.mxu0 0.0
  %94 = vmatprep.subr.mxu0 0.0
  %95 = vmatpush1.msra.mxu0 0.0
  %96 = vmatprep.subr.mxu0 0.0
  %97 = vmatpush1.msra.mxu0 0.0
  %98 = vmatprep.subr.mxu0 0.0
  %99 = vmatpush1.msra.mxu0 0.0
  %100 = vmatprep.subr.mxu0 0.0
  %101 = vmatpush1.msra.mxu0 0.0
  %102 = vmatprep.subr.mxu0 0.0
  %103 = vmatpush1.msra.mxu0 0.0
  %104 = vmatprep.subr.mxu0 %v60
  %105 = vmatpush1.msra.mxu0 %v57
  %106 = vmatprep.subr.mxu0 %v33
  %107 = vmatpush1.msra.mxu0 %v32
  %108 = vmatprep.subr.mxu0 %v25
  %109 = vmatpush1.msra.mxu0 %v24
  %110 = vmatprep.subr.mxu0 %v17
  %111 = vmatpush1.msra.mxu0 %v16
  %112 = vmatprep.subr.mxu0 0.0
  %113 = vmatpush2.msra.mxu0 0.0
  %114 = vmatprep.subr.mxu0 0.0
  %115 = vmatpush2.msra.mxu0 0.0
  %116 = vmatprep.subr.mxu0 0.0
  %117 = vmatpush2.msra.mxu0 0.0
  %118 = vmatprep.subr.mxu0 0.0
  %119 = vmatpush2.msra.mxu0 0.0
  %120 = vmatprep.subr.mxu0 0.0
  %121 = vmatpush2.msra.mxu0 0.0
  %122 = vmatprep.subr.mxu0 0.0
  %123 = vmatpush2.msra.mxu0 0.0
  %124 = vmatprep.subr.mxu0 0.0
  %125 = vmatpush2.msra.mxu0 0.0
  %126 = vmatprep.subr.mxu0 0.0
  %127 = vmatpush2.msra.mxu0 0.0
  %128 = vmatprep.subr.mxu0 0.0
  %129 = vmatpush2.msra.mxu0 0.0
  %130 = vmatprep.subr.mxu0 0.0
  %131 = vmatpush2.msra.mxu0 0.0
  %132 = vmatprep.subr.mxu0 0.0
  %133 = vmatpush2.msra.mxu0 0.0
  %134 = vmatprep.subr.mxu0 0.0
  %135 = vmatpush2.msra.mxu0 0.0
  %136 = vmatprep.subr.mxu0 0.0
  %137 = vmatpush2.msra.mxu0 0.0
  %138 = vmatprep.subr.mxu0 0.0
  %139 = vmatpush2.msra.mxu0 0.0
  %140 = vmatprep.subr.mxu0 0.0
  %141 = vmatpush2.msra.mxu0 0.0
  %142 = vmatprep.subr.mxu0 0.0
  %143 = vmatpush2.msra.mxu0 0.0
  %144 = vmatprep.mubr.f32.mxu0 0.0
  %145 = vmatmul.mubr.f32.gmra.mxu0 %v50
  %v146 = vpop.f32.mrf.mxu0
  %v147 = vadd.f32 0.0, %v146
  %v148 = vpop.f32.mrf.mxu0
  %v149 = vadd.f32 0.0, %v148
  %150 = vmatprep.mubr.f32.mxu0 0.0
  %151 = vmatmul.mubr.f32.gmra.mxu0 %v53
  %v152 = vpop.f32.mrf.mxu0
  %v153 = vadd.f32 0.0, %v152
  %v154 = vpop.f32.mrf.mxu0
  %v155 = vadd.f32 0.0, %v154
  %156 = vdwg.mxu0
  %157 = vmatprep.subr.mxu0 0.0
  %158 = vmatpush1.msra.mxu0 0.0
  %159 = vmatprep.subr.mxu0 0.0
  %160 = vmatpush1.msra.mxu0 0.0
  %161 = vmatprep.subr.mxu0 0.0
  %162 = vmatpush1.msra.mxu0 0.0
  %163 = vmatprep.subr.mxu0 0.0
  %164 = vmatpush1.msra.mxu0 0.0
  %165 = vmatprep.subr.mxu0 0.0
  %166 = vmatpush1.msra.mxu0 0.0
  %167 = vmatprep.subr.mxu0 0.0
  %168 = vmatpush1.msra.mxu0 0.0
  %169 = vmatprep.subr.mxu0 0.0
  %170 = vmatpush1.msra.mxu0 0.0
  %171 = vmatprep.subr.mxu0 0.0
  %172 = vmatpush1.msra.mxu0 0.0
  %173 = vmatprep.subr.mxu0 0.0
  %174 = vmatpush1.msra.mxu0 0.0
  %175 = vmatprep.subr.mxu0 0.0
  %176 = vmatpush1.msra.mxu0 0.0
  %177 = vmatprep.subr.mxu0 0.0
  %178 = vmatpush1.msra.mxu0 0.0
  %179 = vmatprep.subr.mxu0 0.0
  %180 = vmatpush1.msra.mxu0 0.0
  %181 = vmatprep.subr.mxu0 %v66
  %182 = vmatpush1.msra.mxu0 %v63
  %183 = vmatprep.subr.mxu0 %v35
  %184 = vmatpush1.msra.mxu0 %v34
  %185 = vmatprep.subr.mxu0 %v27
  %186 = vmatpush1.msra.mxu0 %v26
  %187 = vmatprep.subr.mxu0 %v19
  %188 = vmatpush1.msra.mxu0 %v18
  %189 = vmatprep.subr.mxu0 0.0
  %190 = vmatpush2.msra.mxu0 0.0
  %191 = vmatprep.subr.mxu0 0.0
  %192 = vmatpush2.msra.mxu0 0.0
  %193 = vmatprep.subr.mxu0 0.0
  %194 = vmatpush2.msra.mxu0 0.0
  %195 = vmatprep.subr.mxu0 0.0
  %196 = vmatpush2.msra.mxu0 0.0
  %197 = vmatprep.subr.mxu0 0.0
  %198 = vmatpush2.msra.mxu0 0.0
  %199 = vmatprep.subr.mxu0 0.0
  %200 = vmatpush2.msra.mxu0 0.0
  %201 = vmatprep.subr.mxu0 0.0
  %202 = vmatpush2.msra.mxu0 0.0
  %203 = vmatprep.subr.mxu0 0.0
  %204 = vmatpush2.msra.mxu0 0.0
  %205 = vmatprep.subr.mxu0 0.0
  %206 = vmatpush2.msra.mxu0 0.0
  %207 = vmatprep.subr.mxu0 0.0
  %208 = vmatpush2.msra.mxu0 0.0
  %209 = vmatprep.subr.mxu0 0.0
  %210 = vmatpush2.msra.mxu0 0.0
  %211 = vmatprep.subr.mxu0 0.0
  %212 = vmatpush2.msra.mxu0 0.0
  %213 = vmatprep.subr.mxu0 0.0
  %214 = vmatpush2.msra.mxu0 0.0
  %215 = vmatprep.subr.mxu0 0.0
  %216 = vmatpush2.msra.mxu0 0.0
  %217 = vmatprep.subr.mxu0 0.0
  %218 = vmatpush2.msra.mxu0 0.0
  %219 = vmatprep.subr.mxu0 0.0
  %220 = vmatpush2.msra.mxu0 0.0
  %221 = vmatprep.mubr.f32.mxu0 0.0
  %222 = vmatmul.mubr.f32.gmra.mxu0 %v50
  %v223 = vpop.f32.mrf.mxu0
  %v224 = vadd.f32 0.0, %v223
  %v225 = vpop.f32.mrf.mxu0
  %v226 = vadd.f32 0.0, %v225
  %227 = vmatprep.mubr.f32.mxu0 0.0
  %228 = vmatmul.mubr.f32.gmra.mxu0 %v53
  %v229 = vpop.f32.mrf.mxu0
  %v230 = vadd.f32 0.0, %v229
  %v231 = vpop.f32.mrf.mxu0
  %v232 = vadd.f32 0.0, %v231
  %233 = vdwg.mxu0
  %234 = vmatprep.subr.mxu0 0.0
  %235 = vmatpush1.msra.mxu0 0.0
  %236 = vmatprep.subr.mxu0 0.0
  %237 = vmatpush1.msra.mxu0 0.0
  %238 = vmatprep.subr.mxu0 0.0
  %239 = vmatpush1.msra.mxu0 0.0
  %240 = vmatprep.subr.mxu0 0.0
  %241 = vmatpush1.msra.mxu0 0.0
  %242 = vmatprep.subr.mxu0 0.0
  %243 = vmatpush1.msra.mxu0 0.0
  %244 = vmatprep.subr.mxu0 0.0
  %245 = vmatpush1.msra.mxu0 0.0
  %246 = vmatprep.subr.mxu0 0.0
  %247 = vmatpush1.msra.mxu0 0.0
  %248 = vmatprep.subr.mxu0 0.0
  %249 = vmatpush1.msra.mxu0 0.0
  %250 = vmatprep.subr.mxu0 0.0
  %251 = vmatpush1.msra.mxu0 0.0
  %252 = vmatprep.subr.mxu0 0.0
  %253 = vmatpush1.msra.mxu0 0.0
  %254 = vmatprep.subr.mxu0 0.0
  %255 = vmatpush1.msra.mxu0 0.0
  %256 = vmatprep.subr.mxu0 0.0
  %257 = vmatpush1.msra.mxu0 0.0
  %258 = vmatprep.subr.mxu0 %v72
  %259 = vmatpush1.msra.mxu0 %v69
  %260 = vmatprep.subr.mxu0 %v37
  %261 = vmatpush1.msra.mxu0 %v36
  %262 = vmatprep.subr.mxu0 %v29
  %263 = vmatpush1.msra.mxu0 %v28
  %264 = vmatprep.subr.mxu0 %v21
  %265 = vmatpush1.msra.mxu0 %v20
  %266 = vmatprep.subr.mxu0 0.0
  %267 = vmatpush2.msra.mxu0 0.0
  %268 = vmatprep.subr.mxu0 0.0
  %269 = vmatpush2.msra.mxu0 0.0
  %270 = vmatprep.subr.mxu0 0.0
  %271 = vmatpush2.msra.mxu0 0.0
  %272 = vmatprep.subr.mxu0 0.0
  %273 = vmatpush2.msra.mxu0 0.0
  %274 = vmatprep.subr.mxu0 0.0
  %275 = vmatpush2.msra.mxu0 0.0
  %276 = vmatprep.subr.mxu0 0.0
  %277 = vmatpush2.msra.mxu0 0.0
  %278 = vmatprep.subr.mxu0 0.0
  %279 = vmatpush2.msra.mxu0 0.0
  %280 = vmatprep.subr.mxu0 0.0
  %281 = vmatpush2.msra.mxu0 0.0
  %282 = vmatprep.subr.mxu0 0.0
  %283 = vmatpush2.msra.mxu0 0.0
  %284 = vmatprep.subr.mxu0 0.0
  %285 = vmatpush2.msra.mxu0 0.0
  %286 = vmatprep.subr.mxu0 0.0
  %287 = vmatpush2.msra.mxu0 0.0
  %288 = vmatprep.subr.mxu0 0.0
  %289 = vmatpush2.msra.mxu0 0.0
  %290 = vmatprep.subr.mxu0 0.0
  %291 = vmatpush2.msra.mxu0 0.0
  %292 = vmatprep.subr.mxu0 0.0
  %293 = vmatpush2.msra.mxu0 0.0
  %294 = vmatprep.subr.mxu0 0.0
  %295 = vmatpush2.msra.mxu0 0.0
  %296 = vmatprep.subr.mxu0 0.0
  %297 = vmatpush2.msra.mxu0 0.0
  %298 = vmatprep.mubr.f32.mxu0 0.0
  %299 = vmatmul.mubr.f32.gmra.mxu0 %v50
  %v300 = vpop.f32.mrf.mxu0
  %v301 = vadd.f32 0.0, %v300
  %v302 = vpop.f32.mrf.mxu0
  %v303 = vadd.f32 0.0, %v302
  %304 = vmatprep.mubr.f32.mxu0 0.0
  %305 = vmatmul.mubr.f32.gmra.mxu0 %v53
  %v306 = vpop.f32.mrf.mxu0
  %v307 = vadd.f32 0.0, %v306
  %v308 = vpop.f32.mrf.mxu0
  %v309 = vadd.f32 0.0, %v308
  %310 = vdwg.mxu0
  %311 = vmatprep.subr.mxu0 0.0
  %312 = vmatpush1.msra.mxu0 0.0
  %313 = vmatprep.subr.mxu0 0.0
  %314 = vmatpush1.msra.mxu0 0.0
  %315 = vmatprep.subr.mxu0 0.0
  %316 = vmatpush1.msra.mxu0 0.0
  %317 = vmatprep.subr.mxu0 0.0
  %318 = vmatpush1.msra.mxu0 0.0
  %319 = vmatprep.subr.mxu0 0.0
  %320 = vmatpush1.msra.mxu0 0.0
  %321 = vmatprep.subr.mxu0 0.0
  %322 = vmatpush1.msra.mxu0 0.0
  %323 = vmatprep.subr.mxu0 0.0
  %324 = vmatpush1.msra.mxu0 0.0
  %325 = vmatprep.subr.mxu0 0.0
  %326 = vmatpush1.msra.mxu0 0.0
  %327 = vmatprep.subr.mxu0 0.0
  %328 = vmatpush1.msra.mxu0 0.0
  %329 = vmatprep.subr.mxu0 0.0
  %330 = vmatpush1.msra.mxu0 0.0
  %331 = vmatprep.subr.mxu0 0.0
  %332 = vmatpush1.msra.mxu0 0.0
  %333 = vmatprep.subr.mxu0 0.0
  %334 = vmatpush1.msra.mxu0 0.0
  %335 = vmatprep.subr.mxu0 %v78
  %336 = vmatpush1.msra.mxu0 %v75
  %337 = vmatprep.subr.mxu0 %v39
  %338 = vmatpush1.msra.mxu0 %v38
  %339 = vmatprep.subr.mxu0 %v31
  %340 = vmatpush1.msra.mxu0 %v30
  %341 = vmatprep.subr.mxu0 %v23
  %342 = vmatpush1.msra.mxu0 %v22
  %343 = vmatprep.subr.mxu0 0.0
  %344 = vmatpush2.msra.mxu0 0.0
  %345 = vmatprep.subr.mxu0 0.0
  %346 = vmatpush2.msra.mxu0 0.0
  %347 = vmatprep.subr.mxu0 0.0
  %348 = vmatpush2.msra.mxu0 0.0
  %349 = vmatprep.subr.mxu0 0.0
  %350 = vmatpush2.msra.mxu0 0.0
  %351 = vmatprep.subr.mxu0 0.0
  %352 = vmatpush2.msra.mxu0 0.0
  %353 = vmatprep.subr.mxu0 0.0
  %354 = vmatpush2.msra.mxu0 0.0
  %355 = vmatprep.subr.mxu0 0.0
  %356 = vmatpush2.msra.mxu0 0.0
  %357 = vmatprep.subr.mxu0 0.0
  %358 = vmatpush2.msra.mxu0 0.0
  %359 = vmatprep.subr.mxu0 0.0
  %360 = vmatpush2.msra.mxu0 0.0
  %361 = vmatprep.subr.mxu0 0.0
  %362 = vmatpush2.msra.mxu0 0.0
  %363 = vmatprep.subr.mxu0 0.0
  %364 = vmatpush2.msra.mxu0 0.0
  %365 = vmatprep.subr.mxu0 0.0
  %366 = vmatpush2.msra.mxu0 0.0
  %367 = vmatprep.subr.mxu0 0.0
  %368 = vmatpush2.msra.mxu0 0.0
  %369 = vmatprep.subr.mxu0 0.0
  %370 = vmatpush2.msra.mxu0 0.0
  %371 = vmatprep.subr.mxu0 0.0
  %372 = vmatpush2.msra.mxu0 0.0
  %373 = vmatprep.subr.mxu0 0.0
  %374 = vmatpush2.msra.mxu0 0.0
  %375 = vmatprep.mubr.f32.mxu0 0.0
  %376 = vmatmul.mubr.f32.gmra.mxu0 %v50
  %v377 = vpop.f32.mrf.mxu0
  %v378 = vadd.f32 0.0, %v377
  %v379 = vpop.f32.mrf.mxu0
  %v380 = vadd.f32 0.0, %v379
  %381 = vmatprep.mubr.f32.mxu0 0.0
  %382 = vmatmul.mubr.f32.gmra.mxu0 %v53
  %v383 = vpop.f32.mrf.mxu0
  %v384 = vadd.f32 0.0, %v383
  %v385 = vpop.f32.mrf.mxu0
  %v386 = vadd.f32 0.0, %v385
  %387 = vdwg.mxu0
  %v388 = vmax.f32 %v147, %v224
  %v389 = vmax.f32 %v149, %v226
  %v390 = vmax.f32 %v153, %v230
  %v391 = vmax.f32 %v155, %v232
  %v392 = vmax.f32 %v301, %v378
  %v393 = vmax.f32 %v303, %v380
  %v394 = vmax.f32 %v307, %v384
  %v395 = vmax.f32 %v309, %v386
  %v396 = vmax.f32 %v388, %v392
  %v397 = vmax.f32 %v389, %v393
  %v398 = vmax.f32 %v390, %v394
  %v399 = vmax.f32 %v391, %v395
  %400 = vset.pattern.permute.xlu0 27
  %401 = vperm.xlu0 %400, %v14
  %v402 = vpop.permute.xlu0 %401
  %404 = vset.pattern.permute.xlu0 27
  %405 = vperm.xlu0 %404, %v15
  %v406 = vpop.permute.xlu0 %405
  %v408 = vadd.f32 %v396, %v402
  %v409 = vadd.f32 %v397, %v402
  %v410 = vadd.f32 %v398, %v406
  %v411 = vadd.f32 %v399, %v406
  %v412 = vmax.f32 %v408, 0.0
  %v413 = vmax.f32 %v409, 0.0
  %v414 = vmax.f32 %v410, 0.0
  %v415 = vmax.f32 %v411, 0.0
  %416 = vst [vmem:[#allocation2] sm:$0xff] 0.0
  %417 = vst [vmem:[#allocation2 + $0x8] sm:$0xff] 0.0
  %418 = vst [vmem:[#allocation2 + $0x10] sm:$0xff] 0.0
  %419 = vst [vmem:[#allocation2 + $0x18] sm:$0xff] 0.0
  %420 = vst [vmem:[#allocation2 + $0x20] sm:$0xff] 0.0
  %421 = vst [vmem:[#allocation2 + $0x28] sm:$0xff] 0.0
  %422 = vst [vmem:[#allocation2 + $0x30] sm:$0xff] 0.0
  %423 = vst [vmem:[#allocation2 + $0x38] sm:$0xff] 0.0
  %424 = vst [vmem:[#allocation2 + $0x40] sm:$0xff] 0.0
  %425 = vst [vmem:[#allocation2 + $0x48] sm:$0xff] 0.0
  %426 = vst [vmem:[#allocation2] sm:$0x1] %v412
  %v428 = vrot.slane %v412, 1
  %430 = vst [vmem:[#allocation2 + $0x8] sm:$0x1] %v428
  %v431 = vrot.slane %v412, 2
  %433 = vst [vmem:[#allocation2 + $0x10] sm:$0x1] %v431
  %v434 = vrot.slane %v412, 3
  %436 = vst [vmem:[#allocation2 + $0x18] sm:$0x1] %v434
  %v437 = vrot.slane %v412, 4
  %439 = vst [vmem:[#allocation2 + $0x20] sm:$0x1] %v437
  %v440 = vrot.slane %v412, 5
  %442 = vst [vmem:[#allocation2 + $0x28] sm:$0x1] %v440
  %v443 = vrot.slane %v412, 6
  %445 = vst [vmem:[#allocation2 + $0x30] sm:$0x1] %v443
  %v446 = vrot.slane %v412, 7
  %448 = vst [vmem:[#allocation2 + $0x38] sm:$0x1] %v446
  %449 = vst [vmem:[#allocation2 + $0x40] sm:$0x1] %v414
  %v451 = vrot.slane %v414, 1
  %453 = vst [vmem:[#allocation2 + $0x48] sm:$0x1] %v451
  %454 = vst [vmem:[#allocation2 + $0x1] sm:$0x1] %v413
  %v456 = vrot.slane %v413, 1
  %458 = vst [vmem:[#allocation2 + $0x9] sm:$0x1] %v456
  %v459 = vrot.slane %v413, 2
  %461 = vst [vmem:[#allocation2 + $0x11] sm:$0x1] %v459
  %v462 = vrot.slane %v413, 3
  %464 = vst [vmem:[#allocation2 + $0x19] sm:$0x1] %v462
  %v465 = vrot.slane %v413, 4
  %467 = vst [vmem:[#allocation2 + $0x21] sm:$0x1] %v465
  %v468 = vrot.slane %v413, 5
  %470 = vst [vmem:[#allocation2 + $0x29] sm:$0x1] %v468
  %v471 = vrot.slane %v413, 6
  %473 = vst [vmem:[#allocation2 + $0x31] sm:$0x1] %v471
  %v474 = vrot.slane %v413, 7
  %476 = vst [vmem:[#allocation2 + $0x39] sm:$0x1] %v474
  %477 = vst [vmem:[#allocation2 + $0x41] sm:$0x1] %v415
  %v479 = vrot.slane %v415, 1
  %481 = vst [vmem:[#allocation2 + $0x49] sm:$0x1] %v479
  %v482 = vld [vmem:[#allocation2] sm:$0xff]
  %v483 = vld [vmem:[#allocation2 + $0x8] sm:$0xff]
  %v484 = vld [vmem:[#allocation2 + $0x10] sm:$0xff]
  %v485 = vld [vmem:[#allocation2 + $0x18] sm:$0xff]
  %v486 = vld [vmem:[#allocation2 + $0x20] sm:$0xff]
  %v487 = vld [vmem:[#allocation2 + $0x28] sm:$0xff]
  %v488 = vld [vmem:[#allocation2 + $0x30] sm:$0xff]
  %v489 = vld [vmem:[#allocation2 + $0x38] sm:$0xff]
  %v490 = vld [vmem:[#allocation2 + $0x40] sm:$0xff]
  %v491 = vld [vmem:[#allocation2 + $0x48] sm:$0xff]
  %v492 = vld [vmem:[%s2] sm:$0xff]
  %v493 = vld [vmem:[%s2 + $0x8] sm:$0xff]
  %v494 = vld [vmem:[%s2 + $0x10] sm:$0xff]
  %v495 = vld [vmem:[%s2 + $0x18] sm:$0xff]
  %v496 = vld [vmem:[%s2 + $0x20] sm:$0xff]
  %v497 = vld [vmem:[%s2 + $0x28] sm:$0xff]
  %v498 = vld [vmem:[%s2 + $0x30] sm:$0xff]
  %v499 = vld [vmem:[%s2 + $0x38] sm:$0xff]
  %v500 = vld [vmem:[%s2 + $0x40] sm:$0xff]
  %v501 = vld [vmem:[%s2 + $0x48] sm:$0xff]
  %v502 = vld [vmem:[%s2 + $0x50] sm:$0xff]
  %v503 = vld [vmem:[%s2 + $0x58] sm:$0xff]
  %v504 = vld [vmem:[%s2 + $0x60] sm:$0xff]
  %v505 = vld [vmem:[%s2 + $0x68] sm:$0xff]
  %v506 = vld [vmem:[%s2 + $0x70] sm:$0xff]
  %v507 = vld [vmem:[%s2 + $0x78] sm:$0xff]
  %v508 = vld [vmem:[%s2 + $0x80] sm:$0xff]
  %v509 = vld [vmem:[%s2 + $0x88] sm:$0xff]
  %v510 = vld [vmem:[%s2 + $0x90] sm:$0xff]
  %v511 = vld [vmem:[%s2 + $0x98] sm:$0xff]
  %v512 = vld [vmem:[%s2 + $0xa0] sm:$0xff]
  %v513 = vld [vmem:[%s2 + $0xa8] sm:$0xff]
  %v514 = vld [vmem:[%s2 + $0xb0] sm:$0xff]
  %v515 = vld [vmem:[%s2 + $0xb8] sm:$0xff]
  %v516 = vld [vmem:[%s2 + $0xc0] sm:$0xff]
  %v517 = vld [vmem:[%s2 + $0xc8] sm:$0xff]
  %v518 = vld [vmem:[%s2 + $0xd0] sm:$0xff]
  %v519 = vld [vmem:[%s2 + $0xd8] sm:$0xff]
  %v520 = vld [vmem:[%s2 + $0xe0] sm:$0xff]
  %v521 = vld [vmem:[%s2 + $0xe8] sm:$0xff]
  %v522 = vld [vmem:[%s2 + $0xf0] sm:$0xff]
  %v523 = vld [vmem:[%s2 + $0xf8] sm:$0xff]
  %v524 = vld [vmem:[%s2 + $0x100] sm:$0xff]
  %v525 = vld [vmem:[%s2 + $0x108] sm:$0xff]
  %v526 = vld [vmem:[%s2 + $0x110] sm:$0xff]
  %v527 = vld [vmem:[%s2 + $0x118] sm:$0xff]
  %v528 = vld [vmem:[%s2 + $0x120] sm:$0xff]
  %v529 = vld [vmem:[%s2 + $0x128] sm:$0xff]
  %v530 = vld [vmem:[%s2 + $0x130] sm:$0xff]
  %v531 = vld [vmem:[%s2 + $0x138] sm:$0xff]
  %v532 = vld [vmem:[%s2 + $0x140] sm:$0xff]
  %v533 = vld [vmem:[%s2 + $0x148] sm:$0xff]
  %v534 = vld [vmem:[%s2 + $0x150] sm:$0xff]
  %v535 = vld [vmem:[%s2 + $0x158] sm:$0xff]
  %v536 = vld [vmem:[%s2 + $0x160] sm:$0xff]
  %v537 = vld [vmem:[%s2 + $0x168] sm:$0xff]
  %v538 = vld [vmem:[%s2 + $0x170] sm:$0xff]
  %v539 = vld [vmem:[%s2 + $0x178] sm:$0xff]
  %v540 = vld [vmem:[%s2 + $0x180] sm:$0xff]
  %v541 = vld [vmem:[%s2 + $0x188] sm:$0xff]
  %v542 = vld [vmem:[%s2 + $0x190] sm:$0xff]
  %v543 = vld [vmem:[%s2 + $0x198] sm:$0xff]
  %v544 = vld [vmem:[%s2 + $0x1a0] sm:$0xff]
  %v545 = vld [vmem:[%s2 + $0x1a8] sm:$0xff]
  %v546 = vld [vmem:[%s2 + $0x1b0] sm:$0xff]
  %v547 = vld [vmem:[%s2 + $0x1b8] sm:$0xff]
  %v548 = vld [vmem:[%s2 + $0x1c0] sm:$0xff]
  %v549 = vld [vmem:[%s2 + $0x1c8] sm:$0xff]
  %v550 = vld [vmem:[%s2 + $0x1d0] sm:$0xff]
  %v551 = vld [vmem:[%s2 + $0x1d8] sm:$0xff]
  %v552 = vld [vmem:[%s2 + $0x1e0] sm:$0xff]
  %v553 = vld [vmem:[%s2 + $0x1e8] sm:$0xff]
  %v554 = vld [vmem:[%s2 + $0x1f0] sm:$0xff]
  %v555 = vld [vmem:[%s2 + $0x1f8] sm:$0xff]
  %v556 = vld [vmem:[%s2 + $0x200] sm:$0xff]
  %v557 = vld [vmem:[%s2 + $0x208] sm:$0xff]
  %v558 = vld [vmem:[%s2 + $0x210] sm:$0xff]
  %v559 = vld [vmem:[%s2 + $0x218] sm:$0xff]
  %v560 = vld [vmem:[%s2 + $0x220] sm:$0xff]
  %v561 = vld [vmem:[%s2 + $0x228] sm:$0xff]
  %v562 = vld [vmem:[%s2 + $0x230] sm:$0xff]
  %v563 = vld [vmem:[%s2 + $0x238] sm:$0xff]
  %v564 = vld [vmem:[%s2 + $0x240] sm:$0xff]
  %v565 = vld [vmem:[%s2 + $0x248] sm:$0xff]
  %v566 = vld [vmem:[%s2 + $0x250] sm:$0xff]
  %v567 = vld [vmem:[%s2 + $0x258] sm:$0xff]
  %v568 = vld [vmem:[%s2 + $0x260] sm:$0xff]
  %v569 = vld [vmem:[%s2 + $0x268] sm:$0xff]
  %v570 = vld [vmem:[%s2 + $0x270] sm:$0xff]
  %v571 = vld [vmem:[%s2 + $0x278] sm:$0xff]
  %v572 = vld [vmem:[%s2 + $0x280] sm:$0xff]
  %v573 = vld [vmem:[%s2 + $0x288] sm:$0xff]
  %v574 = vld [vmem:[%s2 + $0x290] sm:$0xff]
  %v575 = vld [vmem:[%s2 + $0x298] sm:$0xff]
  %v576 = vld [vmem:[%s2 + $0x2a0] sm:$0xff]
  %v577 = vld [vmem:[%s2 + $0x2a8] sm:$0xff]
  %v578 = vld [vmem:[%s2 + $0x2b0] sm:$0xff]
  %v579 = vld [vmem:[%s2 + $0x2b8] sm:$0xff]
  %v580 = vld [vmem:[%s2 + $0x2c0] sm:$0xff]
  %v581 = vld [vmem:[%s2 + $0x2c8] sm:$0xff]
  %v582 = vld [vmem:[%s2 + $0x2d0] sm:$0xff]
  %v583 = vld [vmem:[%s2 + $0x2d8] sm:$0xff]
  %v584 = vld [vmem:[%s2 + $0x2e0] sm:$0xff]
  %v585 = vld [vmem:[%s2 + $0x2e8] sm:$0xff]
  %v586 = vld [vmem:[%s2 + $0x2f0] sm:$0xff]
  %v587 = vld [vmem:[%s2 + $0x2f8] sm:$0xff]
  %v588 = vld [vmem:[%s2 + $0x300] sm:$0xff]
  %v589 = vld [vmem:[%s2 + $0x308] sm:$0xff]
  %v590 = vld [vmem:[%s2 + $0x310] sm:$0xff]
  %v591 = vld [vmem:[%s2 + $0x318] sm:$0xff]
  %v592 = vld [vmem:[%s2 + $0x320] sm:$0xff]
  %v593 = vld [vmem:[%s2 + $0x328] sm:$0xff]
  %v594 = vld [vmem:[%s2 + $0x330] sm:$0xff]
  %v595 = vld [vmem:[%s2 + $0x338] sm:$0xff]
  %v596 = vld [vmem:[%s2 + $0x340] sm:$0xff]
  %v597 = vld [vmem:[%s2 + $0x348] sm:$0xff]
  %v598 = vld [vmem:[%s2 + $0x350] sm:$0xff]
  %v599 = vld [vmem:[%s2 + $0x358] sm:$0xff]
  %v600 = vld [vmem:[%s2 + $0x360] sm:$0xff]
  %v601 = vld [vmem:[%s2 + $0x368] sm:$0xff]
  %v602 = vld [vmem:[%s2 + $0x370] sm:$0xff]
  %v603 = vld [vmem:[%s2 + $0x378] sm:$0xff]
  %v604 = vld [vmem:[%s2 + $0x380] sm:$0xff]
  %v605 = vld [vmem:[%s2 + $0x388] sm:$0xff]
  %v606 = vld [vmem:[%s2 + $0x390] sm:$0xff]
  %v607 = vld [vmem:[%s2 + $0x398] sm:$0xff]
  %v608 = vld [vmem:[%s2 + $0x3a0] sm:$0xff]
  %v609 = vld [vmem:[%s2 + $0x3a8] sm:$0xff]
  %v610 = vld [vmem:[%s2 + $0x3b0] sm:$0xff]
  %v611 = vld [vmem:[%s2 + $0x3b8] sm:$0xff]
  %v612 = vld [vmem:[%s2 + $0x3c0] sm:$0xff]
  %v613 = vld [vmem:[%s2 + $0x3c8] sm:$0xff]
  %v614 = vld [vmem:[%s2 + $0x3d0] sm:$0xff]
  %v615 = vld [vmem:[%s2 + $0x3d8] sm:$0xff]
  %v616 = vld [vmem:[%s2 + $0x3e0] sm:$0xff]
  %v617 = vld [vmem:[%s2 + $0x3e8] sm:$0xff]
  %v618 = vld [vmem:[%s2 + $0x3f0] sm:$0xff]
  %v619 = vld [vmem:[%s2 + $0x3f8] sm:$0xff]
  %v620 = vld [vmem:[%s2 + $0x400] sm:$0xff]
  %v621 = vld [vmem:[%s2 + $0x408] sm:$0xff]
  %v622 = vld [vmem:[%s2 + $0x410] sm:$0xff]
  %v623 = vld [vmem:[%s2 + $0x418] sm:$0xff]
  %v624 = vld [vmem:[%s2 + $0x420] sm:$0xff]
  %v625 = vld [vmem:[%s2 + $0x428] sm:$0xff]
  %v626 = vld [vmem:[%s2 + $0x430] sm:$0xff]
  %v627 = vld [vmem:[%s2 + $0x438] sm:$0xff]
  %v628 = vld [vmem:[%s2 + $0x440] sm:$0xff]
  %v629 = vld [vmem:[%s2 + $0x448] sm:$0xff]
  %v630 = vld [vmem:[%s2 + $0x450] sm:$0xff]
  %v631 = vld [vmem:[%s2 + $0x458] sm:$0xff]
  %v632 = vld [vmem:[%s2 + $0x460] sm:$0xff]
  %v633 = vld [vmem:[%s2 + $0x468] sm:$0xff]
  %v634 = vld [vmem:[%s2 + $0x470] sm:$0xff]
  %v635 = vld [vmem:[%s2 + $0x478] sm:$0xff]
  %v636 = vld [vmem:[%s2 + $0x480] sm:$0xff]
  %v637 = vld [vmem:[%s2 + $0x488] sm:$0xff]
  %v638 = vld [vmem:[%s2 + $0x490] sm:$0xff]
  %v639 = vld [vmem:[%s2 + $0x498] sm:$0xff]
  %v640 = vld [vmem:[%s2 + $0x4a0] sm:$0xff]
  %v641 = vld [vmem:[%s2 + $0x4a8] sm:$0xff]
  %v642 = vld [vmem:[%s2 + $0x4b0] sm:$0xff]
  %v643 = vld [vmem:[%s2 + $0x4b8] sm:$0xff]
  %v644 = vld [vmem:[%s2 + $0x4c0] sm:$0xff]
  %v645 = vld [vmem:[%s2 + $0x4c8] sm:$0xff]
  %v646 = vld [vmem:[%s2 + $0x4d0] sm:$0xff]
  %v647 = vld [vmem:[%s2 + $0x4d8] sm:$0xff]
  %v648 = vld [vmem:[%s2 + $0x4e0] sm:$0xff]
  %v649 = vld [vmem:[%s2 + $0x4e8] sm:$0xff]
  %v650 = vld [vmem:[%s2 + $0x4f0] sm:$0xff]
  %v651 = vld [vmem:[%s2 + $0x4f8] sm:$0xff]
  %v652 = vld [vmem:[%s1 + $0x20] sm:$0x1]
  %v653 = vlaneseq
  %v654 = vshrl.u32 %v653, 7
  %v655 = vsub.s32 0, %v654
  %v656 = vrot.slane %v652, %v655
  %657 = vmatprep.subr.mxu0 0.0
  %658 = vmatpush1.msra.mxu0 %v507
  %659 = vmatprep.subr.mxu0 0.0
  %660 = vmatpush1.msra.mxu0 %v506
  %661 = vmatprep.subr.mxu0 0.0
  %662 = vmatpush1.msra.mxu0 %v505
  %663 = vmatprep.subr.mxu0 0.0
  %664 = vmatpush1.msra.mxu0 %v504
  %665 = vmatprep.subr.mxu0 0.0
  %666 = vmatpush1.msra.mxu0 %v503
  %667 = vmatprep.subr.mxu0 0.0
  %668 = vmatpush1.msra.mxu0 %v502
  %669 = vmatprep.subr.mxu0 0.0
  %670 = vmatpush1.msra.mxu0 %v501
  %671 = vmatprep.subr.mxu0 0.0
  %672 = vmatpush1.msra.mxu0 %v500
  %673 = vmatprep.subr.mxu0 0.0
  %674 = vmatpush1.msra.mxu0 %v499
  %675 = vmatprep.subr.mxu0 0.0
  %676 = vmatpush1.msra.mxu0 %v498
  %677 = vmatprep.subr.mxu0 0.0
  %678 = vmatpush1.msra.mxu0 %v497
  %679 = vmatprep.subr.mxu0 0.0
  %680 = vmatpush1.msra.mxu0 %v496
  %681 = vmatprep.subr.mxu0 0.0
  %682 = vmatpush1.msra.mxu0 %v495
  %683 = vmatprep.subr.mxu0 0.0
  %684 = vmatpush1.msra.mxu0 %v494
  %685 = vmatprep.subr.mxu0 0.0
  %686 = vmatpush1.msra.mxu0 %v493
  %687 = vmatprep.subr.mxu0 0.0
  %688 = vmatpush1.msra.mxu0 %v492
  %689 = vmatprep.subr.mxu0 0.0
  %690 = vmatpush2.msra.mxu0 %v523
  %691 = vmatprep.subr.mxu0 0.0
  %692 = vmatpush2.msra.mxu0 %v522
  %693 = vmatprep.subr.mxu0 0.0
  %694 = vmatpush2.msra.mxu0 %v521
  %695 = vmatprep.subr.mxu0 0.0
  %696 = vmatpush2.msra.mxu0 %v520
  %697 = vmatprep.subr.mxu0 0.0
  %698 = vmatpush2.msra.mxu0 %v519
  %699 = vmatprep.subr.mxu0 0.0
  %700 = vmatpush2.msra.mxu0 %v518
  %701 = vmatprep.subr.mxu0 0.0
  %702 = vmatpush2.msra.mxu0 %v517
  %703 = vmatprep.subr.mxu0 0.0
  %704 = vmatpush2.msra.mxu0 %v516
  %705 = vmatprep.subr.mxu0 0.0
  %706 = vmatpush2.msra.mxu0 %v515
  %707 = vmatprep.subr.mxu0 0.0
  %708 = vmatpush2.msra.mxu0 %v514
  %709 = vmatprep.subr.mxu0 0.0
  %710 = vmatpush2.msra.mxu0 %v513
  %711 = vmatprep.subr.mxu0 0.0
  %712 = vmatpush2.msra.mxu0 %v512
  %713 = vmatprep.subr.mxu0 0.0
  %714 = vmatpush2.msra.mxu0 %v511
  %715 = vmatprep.subr.mxu0 0.0
  %716 = vmatpush2.msra.mxu0 %v510
  %717 = vmatprep.subr.mxu0 0.0
  %718 = vmatpush2.msra.mxu0 %v509
  %719 = vmatprep.subr.mxu0 0.0
  %720 = vmatpush2.msra.mxu0 %v508
  %721 = vmatprep.mubr.f32.mxu0 %v483
  %722 = vmatmul.mubr.f32.gmra.mxu0 %v482
  %v723 = vpop.f32.mrf.mxu0
  %v724 = vadd.f32 %v656, %v723
  %v725 = vpop.f32.mrf.mxu0
  %726 = vdwg.mxu0
  %727 = vmatprep.subr.mxu0 0.0
  %728 = vmatpush1.msra.mxu0 %v539
  %729 = vmatprep.subr.mxu0 0.0
  %730 = vmatpush1.msra.mxu0 %v538
  %731 = vmatprep.subr.mxu0 0.0
  %732 = vmatpush1.msra.mxu0 %v537
  %733 = vmatprep.subr.mxu0 0.0
  %734 = vmatpush1.msra.mxu0 %v536
  %735 = vmatprep.subr.mxu0 0.0
  %736 = vmatpush1.msra.mxu0 %v535
  %737 = vmatprep.subr.mxu0 0.0
  %738 = vmatpush1.msra.mxu0 %v534
  %739 = vmatprep.subr.mxu0 0.0
  %740 = vmatpush1.msra.mxu0 %v533
  %741 = vmatprep.subr.mxu0 0.0
  %742 = vmatpush1.msra.mxu0 %v532
  %743 = vmatprep.subr.mxu0 0.0
  %744 = vmatpush1.msra.mxu0 %v531
  %745 = vmatprep.subr.mxu0 0.0
  %746 = vmatpush1.msra.mxu0 %v530
  %747 = vmatprep.subr.mxu0 0.0
  %748 = vmatpush1.msra.mxu0 %v529
  %749 = vmatprep.subr.mxu0 0.0
  %750 = vmatpush1.msra.mxu0 %v528
  %751 = vmatprep.subr.mxu0 0.0
  %752 = vmatpush1.msra.mxu0 %v527
  %753 = vmatprep.subr.mxu0 0.0
  %754 = vmatpush1.msra.mxu0 %v526
  %755 = vmatprep.subr.mxu0 0.0
  %756 = vmatpush1.msra.mxu0 %v525
  %757 = vmatprep.subr.mxu0 0.0
  %758 = vmatpush1.msra.mxu0 %v524
  %759 = vmatprep.subr.mxu0 0.0
  %760 = vmatpush2.msra.mxu0 %v555
  %761 = vmatprep.subr.mxu0 0.0
  %762 = vmatpush2.msra.mxu0 %v554
  %763 = vmatprep.subr.mxu0 0.0
  %764 = vmatpush2.msra.mxu0 %v553
  %765 = vmatprep.subr.mxu0 0.0
  %766 = vmatpush2.msra.mxu0 %v552
  %767 = vmatprep.subr.mxu0 0.0
  %768 = vmatpush2.msra.mxu0 %v551
  %769 = vmatprep.subr.mxu0 0.0
  %770 = vmatpush2.msra.mxu0 %v550
  %771 = vmatprep.subr.mxu0 0.0
  %772 = vmatpush2.msra.mxu0 %v549
  %773 = vmatprep.subr.mxu0 0.0
  %774 = vmatpush2.msra.mxu0 %v548
  %775 = vmatprep.subr.mxu0 0.0
  %776 = vmatpush2.msra.mxu0 %v547
  %777 = vmatprep.subr.mxu0 0.0
  %778 = vmatpush2.msra.mxu0 %v546
  %779 = vmatprep.subr.mxu0 0.0
  %780 = vmatpush2.msra.mxu0 %v545
  %781 = vmatprep.subr.mxu0 0.0
  %782 = vmatpush2.msra.mxu0 %v544
  %783 = vmatprep.subr.mxu0 0.0
  %784 = vmatpush2.msra.mxu0 %v543
  %785 = vmatprep.subr.mxu0 0.0
  %786 = vmatpush2.msra.mxu0 %v542
  %787 = vmatprep.subr.mxu0 0.0
  %788 = vmatpush2.msra.mxu0 %v541
  %789 = vmatprep.subr.mxu0 0.0
  %790 = vmatpush2.msra.mxu0 %v540
  %791 = vmatprep.mubr.f32.mxu0 %v485
  %792 = vmatmul.mubr.f32.gmra.mxu0 %v484
  %v793 = vpop.f32.mrf.mxu0
  %v794 = vadd.f32 %v724, %v793
  %v795 = vpop.f32.mrf.mxu0
  %796 = vdwg.mxu0
  %797 = vmatprep.subr.mxu0 0.0
  %798 = vmatpush1.msra.mxu0 %v571
  %799 = vmatprep.subr.mxu0 0.0
  %800 = vmatpush1.msra.mxu0 %v570
  %801 = vmatprep.subr.mxu0 0.0
  %802 = vmatpush1.msra.mxu0 %v569
  %803 = vmatprep.subr.mxu0 0.0
  %804 = vmatpush1.msra.mxu0 %v568
  %805 = vmatprep.subr.mxu0 0.0
  %806 = vmatpush1.msra.mxu0 %v567
  %807 = vmatprep.subr.mxu0 0.0
  %808 = vmatpush1.msra.mxu0 %v566
  %809 = vmatprep.subr.mxu0 0.0
  %810 = vmatpush1.msra.mxu0 %v565
  %811 = vmatprep.subr.mxu0 0.0
  %812 = vmatpush1.msra.mxu0 %v564
  %813 = vmatprep.subr.mxu0 0.0
  %814 = vmatpush1.msra.mxu0 %v563
  %815 = vmatprep.subr.mxu0 0.0
  %816 = vmatpush1.msra.mxu0 %v562
  %817 = vmatprep.subr.mxu0 0.0
  %818 = vmatpush1.msra.mxu0 %v561
  %819 = vmatprep.subr.mxu0 0.0
  %820 = vmatpush1.msra.mxu0 %v560
  %821 = vmatprep.subr.mxu0 0.0
  %822 = vmatpush1.msra.mxu0 %v559
  %823 = vmatprep.subr.mxu0 0.0
  %824 = vmatpush1.msra.mxu0 %v558
  %825 = vmatprep.subr.mxu0 0.0
  %826 = vmatpush1.msra.mxu0 %v557
  %827 = vmatprep.subr.mxu0 0.0
  %828 = vmatpush1.msra.mxu0 %v556
  %829 = vmatprep.subr.mxu0 0.0
  %830 = vmatpush2.msra.mxu0 %v587
  %831 = vmatprep.subr.mxu0 0.0
  %832 = vmatpush2.msra.mxu0 %v586
  %833 = vmatprep.subr.mxu0 0.0
  %834 = vmatpush2.msra.mxu0 %v585
  %835 = vmatprep.subr.mxu0 0.0
  %836 = vmatpush2.msra.mxu0 %v584
  %837 = vmatprep.subr.mxu0 0.0
  %838 = vmatpush2.msra.mxu0 %v583
  %839 = vmatprep.subr.mxu0 0.0
  %840 = vmatpush2.msra.mxu0 %v582
  %841 = vmatprep.subr.mxu0 0.0
  %842 = vmatpush2.msra.mxu0 %v581
  %843 = vmatprep.subr.mxu0 0.0
  %844 = vmatpush2.msra.mxu0 %v580
  %845 = vmatprep.subr.mxu0 0.0
  %846 = vmatpush2.msra.mxu0 %v579
  %847 = vmatprep.subr.mxu0 0.0
  %848 = vmatpush2.msra.mxu0 %v578
  %849 = vmatprep.subr.mxu0 0.0
  %850 = vmatpush2.msra.mxu0 %v577
  %851 = vmatprep.subr.mxu0 0.0
  %852 = vmatpush2.msra.mxu0 %v576
  %853 = vmatprep.subr.mxu0 0.0
  %854 = vmatpush2.msra.mxu0 %v575
  %855 = vmatprep.subr.mxu0 0.0
  %856 = vmatpush2.msra.mxu0 %v574
  %857 = vmatprep.subr.mxu0 0.0
  %858 = vmatpush2.msra.mxu0 %v573
  %859 = vmatprep.subr.mxu0 0.0
  %860 = vmatpush2.msra.mxu0 %v572
  %861 = vmatprep.mubr.f32.mxu0 %v487
  %862 = vmatmul.mubr.f32.gmra.mxu0 %v486
  %v863 = vpop.f32.mrf.mxu0
  %v864 = vadd.f32 %v794, %v863
  %v865 = vpop.f32.mrf.mxu0
  %866 = vdwg.mxu0
  %867 = vmatprep.subr.mxu0 0.0
  %868 = vmatpush1.msra.mxu0 %v603
  %869 = vmatprep.subr.mxu0 0.0
  %870 = vmatpush1.msra.mxu0 %v602
  %871 = vmatprep.subr.mxu0 0.0
  %872 = vmatpush1.msra.mxu0 %v601
  %873 = vmatprep.subr.mxu0 0.0
  %874 = vmatpush1.msra.mxu0 %v600
  %875 = vmatprep.subr.mxu0 0.0
  %876 = vmatpush1.msra.mxu0 %v599
  %877 = vmatprep.subr.mxu0 0.0
  %878 = vmatpush1.msra.mxu0 %v598
  %879 = vmatprep.subr.mxu0 0.0
  %880 = vmatpush1.msra.mxu0 %v597
  %881 = vmatprep.subr.mxu0 0.0
  %882 = vmatpush1.msra.mxu0 %v596
  %883 = vmatprep.subr.mxu0 0.0
  %884 = vmatpush1.msra.mxu0 %v595
  %885 = vmatprep.subr.mxu0 0.0
  %886 = vmatpush1.msra.mxu0 %v594
  %887 = vmatprep.subr.mxu0 0.0
  %888 = vmatpush1.msra.mxu0 %v593
  %889 = vmatprep.subr.mxu0 0.0
  %890 = vmatpush1.msra.mxu0 %v592
  %891 = vmatprep.subr.mxu0 0.0
  %892 = vmatpush1.msra.mxu0 %v591
  %893 = vmatprep.subr.mxu0 0.0
  %894 = vmatpush1.msra.mxu0 %v590
  %895 = vmatprep.subr.mxu0 0.0
  %896 = vmatpush1.msra.mxu0 %v589
  %897 = vmatprep.subr.mxu0 0.0
  %898 = vmatpush1.msra.mxu0 %v588
  %899 = vmatprep.subr.mxu0 0.0
  %900 = vmatpush2.msra.mxu0 %v619
  %901 = vmatprep.subr.mxu0 0.0
  %902 = vmatpush2.msra.mxu0 %v618
  %903 = vmatprep.subr.mxu0 0.0
  %904 = vmatpush2.msra.mxu0 %v617
  %905 = vmatprep.subr.mxu0 0.0
  %906 = vmatpush2.msra.mxu0 %v616
  %907 = vmatprep.subr.mxu0 0.0
  %908 = vmatpush2.msra.mxu0 %v615
  %909 = vmatprep.subr.mxu0 0.0
  %910 = vmatpush2.msra.mxu0 %v614
  %911 = vmatprep.subr.mxu0 0.0
  %912 = vmatpush2.msra.mxu0 %v613
  %913 = vmatprep.subr.mxu0 0.0
  %914 = vmatpush2.msra.mxu0 %v612
  %915 = vmatprep.subr.mxu0 0.0
  %916 = vmatpush2.msra.mxu0 %v611
  %917 = vmatprep.subr.mxu0 0.0
  %918 = vmatpush2.msra.mxu0 %v610
  %919 = vmatprep.subr.mxu0 0.0
  %920 = vmatpush2.msra.mxu0 %v609
  %921 = vmatprep.subr.mxu0 0.0
  %922 = vmatpush2.msra.mxu0 %v608
  %923 = vmatprep.subr.mxu0 0.0
  %924 = vmatpush2.msra.mxu0 %v607
  %925 = vmatprep.subr.mxu0 0.0
  %926 = vmatpush2.msra.mxu0 %v606
  %927 = vmatprep.subr.mxu0 0.0
  %928 = vmatpush2.msra.mxu0 %v605
  %929 = vmatprep.subr.mxu0 0.0
  %930 = vmatpush2.msra.mxu0 %v604
  %931 = vmatprep.mubr.f32.mxu0 %v489
  %932 = vmatmul.mubr.f32.gmra.mxu0 %v488
  %v933 = vpop.f32.mrf.mxu0
  %v934 = vadd.f32 %v864, %v933
  %v935 = vpop.f32.mrf.mxu0
  %936 = vdwg.mxu0
  %937 = vmatprep.subr.mxu0 0.0
  %938 = vmatpush1.msra.mxu0 %v635
  %939 = vmatprep.subr.mxu0 0.0
  %940 = vmatpush1.msra.mxu0 %v634
  %941 = vmatprep.subr.mxu0 0.0
  %942 = vmatpush1.msra.mxu0 %v633
  %943 = vmatprep.subr.mxu0 0.0
  %944 = vmatpush1.msra.mxu0 %v632
  %945 = vmatprep.subr.mxu0 0.0
  %946 = vmatpush1.msra.mxu0 %v631
  %947 = vmatprep.subr.mxu0 0.0
  %948 = vmatpush1.msra.mxu0 %v630
  %949 = vmatprep.subr.mxu0 0.0
  %950 = vmatpush1.msra.mxu0 %v629
  %951 = vmatprep.subr.mxu0 0.0
  %952 = vmatpush1.msra.mxu0 %v628
  %953 = vmatprep.subr.mxu0 0.0
  %954 = vmatpush1.msra.mxu0 %v627
  %955 = vmatprep.subr.mxu0 0.0
  %956 = vmatpush1.msra.mxu0 %v626
  %957 = vmatprep.subr.mxu0 0.0
  %958 = vmatpush1.msra.mxu0 %v625
  %959 = vmatprep.subr.mxu0 0.0
  %960 = vmatpush1.msra.mxu0 %v624
  %961 = vmatprep.subr.mxu0 0.0
  %962 = vmatpush1.msra.mxu0 %v623
  %963 = vmatprep.subr.mxu0 0.0
  %964 = vmatpush1.msra.mxu0 %v622
  %965 = vmatprep.subr.mxu0 0.0
  %966 = vmatpush1.msra.mxu0 %v621
  %967 = vmatprep.subr.mxu0 0.0
  %968 = vmatpush1.msra.mxu0 %v620
  %969 = vmatprep.subr.mxu0 0.0
  %970 = vmatpush2.msra.mxu0 %v651
  %971 = vmatprep.subr.mxu0 0.0
  %972 = vmatpush2.msra.mxu0 %v650
  %973 = vmatprep.subr.mxu0 0.0
  %974 = vmatpush2.msra.mxu0 %v649
  %975 = vmatprep.subr.mxu0 0.0
  %976 = vmatpush2.msra.mxu0 %v648
  %977 = vmatprep.subr.mxu0 0.0
  %978 = vmatpush2.msra.mxu0 %v647
  %979 = vmatprep.subr.mxu0 0.0
  %980 = vmatpush2.msra.mxu0 %v646
  %981 = vmatprep.subr.mxu0 0.0
  %982 = vmatpush2.msra.mxu0 %v645
  %983 = vmatprep.subr.mxu0 0.0
  %984 = vmatpush2.msra.mxu0 %v644
  %985 = vmatprep.subr.mxu0 0.0
  %986 = vmatpush2.msra.mxu0 %v643
  %987 = vmatprep.subr.mxu0 0.0
  %988 = vmatpush2.msra.mxu0 %v642
  %989 = vmatprep.subr.mxu0 0.0
  %990 = vmatpush2.msra.mxu0 %v641
  %991 = vmatprep.subr.mxu0 0.0
  %992 = vmatpush2.msra.mxu0 %v640
  %993 = vmatprep.subr.mxu0 0.0
  %994 = vmatpush2.msra.mxu0 %v639
  %995 = vmatprep.subr.mxu0 0.0
  %996 = vmatpush2.msra.mxu0 %v638
  %997 = vmatprep.subr.mxu0 0.0
  %998 = vmatpush2.msra.mxu0 %v637
  %999 = vmatprep.subr.mxu0 0.0
  %1000 = vmatpush2.msra.mxu0 %v636
  %1001 = vmatprep.mubr.f32.mxu0 %v491
  %1002 = vmatmul.mubr.f32.gmra.mxu0 %v490
  %v1003 = vpop.f32.mrf.mxu0
  %v1004 = vadd.f32 %v934, %v1003
  %v1005 = vpop.f32.mrf.mxu0
  %1006 = vdwg.mxu0
  %v1007 = vmax.f32 %v1004, 0.0
  %v1008 = vld [vmem:[%s1 + $0x10] sm:$0xff]
  %v1009 = vld [vmem:[%s1 + $0x18] sm:$0x3]
  %v1010 = vld [vmem:[%s1 + $0x28] sm:$0x1]
  %v1011 = vlaneseq
  %v1012 = vshrl.u32 %v1011, 7
  %v1013 = vsub.s32 0, %v1012
  %v1014 = vrot.slane %v1010, %v1013
  %vm1015 = vcmask 80896
  %v1017 = vsel %vm1015, %v1007, 0
  %vm1019 = vcmask 1041408
  %v1021 = vsel %vm1019, %v1009, 0
  %1023 = vmatprep.subr.mxu0 0.0
  %1024 = vmatpush1.msra.mxu0 0.0
  %1025 = vmatprep.subr.mxu0 0.0
  %1026 = vmatpush1.msra.mxu0 0.0
  %1027 = vmatprep.subr.mxu0 0.0
  %1028 = vmatpush1.msra.mxu0 0.0
  %1029 = vmatprep.subr.mxu0 0.0
  %1030 = vmatpush1.msra.mxu0 0.0
  %1031 = vmatprep.subr.mxu0 0.0
  %1032 = vmatpush1.msra.mxu0 0.0
  %1033 = vmatprep.subr.mxu0 0.0
  %1034 = vmatpush1.msra.mxu0 0.0
  %1035 = vmatprep.subr.mxu0 0.0
  %1036 = vmatpush1.msra.mxu0 0.0
  %1037 = vmatprep.subr.mxu0 0.0
  %1038 = vmatpush1.msra.mxu0 0.0
  %1039 = vmatprep.subr.mxu0 0.0
  %1040 = vmatpush1.msra.mxu0 0.0
  %1041 = vmatprep.subr.mxu0 0.0
  %1042 = vmatpush1.msra.mxu0 0.0
  %1043 = vmatprep.subr.mxu0 0.0
  %1044 = vmatpush1.msra.mxu0 0.0
  %1045 = vmatprep.subr.mxu0 0.0
  %1046 = vmatpush1.msra.mxu0 0.0
  %1047 = vmatprep.subr.mxu0 0.0
  %1048 = vmatpush1.msra.mxu0 0.0
  %1049 = vmatprep.subr.mxu0 0.0
  %1050 = vmatpush1.msra.mxu0 0.0
  %1051 = vmatprep.subr.mxu0 0.0
  %1052 = vmatpush1.msra.mxu0 %v1021
  %1053 = vmatprep.subr.mxu0 0.0
  %1054 = vmatpush1.msra.mxu0 %v1008
  %1055 = vmatprep.subr.mxu0 0.0
  %1056 = vmatpush2.msra.mxu0 0.0
  %1057 = vmatprep.subr.mxu0 0.0
  %1058 = vmatpush2.msra.mxu0 0.0
  %1059 = vmatprep.subr.mxu0 0.0
  %1060 = vmatpush2.msra.mxu0 0.0
  %1061 = vmatprep.subr.mxu0 0.0
  %1062 = vmatpush2.msra.mxu0 0.0
  %1063 = vmatprep.subr.mxu0 0.0
  %1064 = vmatpush2.msra.mxu0 0.0
  %1065 = vmatprep.subr.mxu0 0.0
  %1066 = vmatpush2.msra.mxu0 0.0
  %1067 = vmatprep.subr.mxu0 0.0
  %1068 = vmatpush2.msra.mxu0 0.0
  %1069 = vmatprep.subr.mxu0 0.0
  %1070 = vmatpush2.msra.mxu0 0.0
  %1071 = vmatprep.subr.mxu0 0.0
  %1072 = vmatpush2.msra.mxu0 0.0
  %1073 = vmatprep.subr.mxu0 0.0
  %1074 = vmatpush2.msra.mxu0 0.0
  %1075 = vmatprep.subr.mxu0 0.0
  %1076 = vmatpush2.msra.mxu0 0.0
  %1077 = vmatprep.subr.mxu0 0.0
  %1078 = vmatpush2.msra.mxu0 0.0
  %1079 = vmatprep.subr.mxu0 0.0
  %1080 = vmatpush2.msra.mxu0 0.0
  %1081 = vmatprep.subr.mxu0 0.0
  %1082 = vmatpush2.msra.mxu0 0.0
  %1083 = vmatprep.subr.mxu0 0.0
  %1084 = vmatpush2.msra.mxu0 0.0
  %1085 = vmatprep.subr.mxu0 0.0
  %1086 = vmatpush2.msra.mxu0 0.0
  %1087 = vmatprep.mubr.f32.mxu0 0.0
  %1088 = vmatmul.mubr.f32.gmra.mxu0 %v1017
  %v1089 = vpop.f32.mrf.mxu0
  %v1090 = vadd.f32 %v1014, %v1089
  %v1091 = vpop.f32.mrf.mxu0
  %1092 = vdwg.mxu0
  %1093 = vst [vmem:[%s3] sm:$0xff] %v1090
  // Predicated region
  $region14: #{simple_conv_net.1} parent=0 // pred_check
    _
  $region15: #{simple_conv_net.1} parent=0 // pred_check_branch
    %1095 = sbr.rel (0) target = $region17
  $region16: #{simple_conv_net.1} parent=0 // pred_region
    _
  $region17: #{simple_conv_net.1} parent=0 // pred_fallthru
    _
  // Predicated region
  $region18: #{simple_conv_net.1} parent=0 // pred_check
    _
  $region19: #{simple_conv_net.1} parent=0 // pred_check_branch
    %1097 = sbr.rel (0) target = $region21
  $region20: #{simple_conv_net.1} parent=0 // pred_region
    _
  $region21: #{simple_conv_net.1} parent=0 // pred_fallthru
    _

</llo_original>
